<compile_context>
chip_gen: v7x
topology: tpu7x:2x2x1
jax: 0.10.0
libtpu: 0.0.40
codegen_flags: <defaults>
</compile_context>

<pallas_src>
import functools

import jax
import jax.numpy as jnp
from jax.experimental import pallas as pl
from jax.experimental.pallas import tpu as pltpu


def _round_up(x, m):
    return ((x + m - 1) // m) * m


def _graph_classifier_kernel(h_ref, mask_ref, w1_ref, b1_ref, w2_ref, b2_ref,
                             out_ref, *, readout: str):
    h = h_ref[...]                       # (TB, N, D)  compute dtype
    mask = mask_ref[...]                 # (TB, N)     float32
    w1 = w1_ref[...]                     # (D, Hp)
    b1 = b1_ref[...]                     # (1, Hp)
    w2 = w2_ref[...]                     # (Hp, Op)
    b2 = b2_ref[...]                     # (1, Op)

    if readout in ("mean", "sum"):
        # Masked sum over nodes as a batched MXU contraction:
        #   (TB, 1, N) @ (TB, N, D) -> (TB, 1, D), f32 accumulate.
        feats = jnp.einsum(
            "bon,bnd->bod",
            mask.astype(h.dtype)[:, None, :], h,
            preferred_element_type=jnp.float32)[:, 0, :]          # (TB, D) f32
        if readout == "mean":
            cnt = jnp.sum(mask, axis=1, keepdims=True)            # (TB, 1)
            inv = pl.reciprocal(jnp.maximum(cnt, 1.0), approx=True)  # EUP slot
            feats = feats * inv
    elif readout == "max":
        # Masked max; guard fully-padded graphs (would otherwise give -inf -> NaN).
        neg = jnp.asarray(-3.0e38, dtype=jnp.float32)
        hm = jnp.where(mask[:, :, None] > 0.0, h.astype(jnp.float32), neg)
        feats = jnp.max(hm, axis=1)                               # (TB, D) f32
        any_valid = jnp.sum(mask, axis=1, keepdims=True) > 0.0
        feats = jnp.where(any_valid, feats, 0.0)
    else:
        raise ValueError(f"Unsupported readout method: {readout}")

    # fc + ReLU  (MXU, f32 accumulate)
    hidden = jnp.dot(feats.astype(w1.dtype), w1,
                     preferred_element_type=jnp.float32)
    hidden = jnp.maximum(hidden + b1, 0.0)                        # (TB, Hp) f32

    # classify
    out = jnp.dot(hidden.astype(w2.dtype), w2,
                  preferred_element_type=jnp.float32)
    out_ref[...] = (out + b2).astype(out_ref.dtype)               # (TB, Op)


def graph_classifier_forward(h, mask, w1, b1, w2, b2, *, readout="mean",
                             compute_dtype=jnp.float32, tile_b=None,
                             vmem_tile_budget_bytes=4 * 1024 * 1024):
    """h: [B, N, D], mask: [B, N], w1: [D, H], b1: [1, H], w2: [H, O], b2: [1, O]."""
    B, N, D = h.shape
    H = w1.shape[1]
    O = w2.shape[1]

    # Lane-dense padding of hidden / output feature dims (multiples of 128).
    Hp = _round_up(max(H, 1), 128)
    Op = _round_up(max(O, 1), 128)

    # Batch tile: target 128 rows for the MXU M dim, but keep a single h buffer
    # within the VMEM budget so double-buffering fits every chip generation.
    if tile_b is None:
        bytes_per_graph = N * D * jnp.dtype(compute_dtype).itemsize
        budget_tb = max(
            8, (vmem_tile_budget_bytes // max(bytes_per_graph, 1)) // 8 * 8)
        tb = min(128, budget_tb, _round_up(B, 8))
    else:
        tb = int(tile_b)
    Bp = _round_up(B, tb)

    # Zero-pad: padded graphs have mask == 0 (contribute nothing); padded
    # hidden/output channels are zero and get sliced off at the end.
    h_p = jnp.pad(h, ((0, Bp - B), (0, 0), (0, 0))).astype(compute_dtype)
    mask_p = jnp.pad(mask, ((0, Bp - B), (0, 0))).astype(jnp.float32)
    w1_p = jnp.pad(w1, ((0, 0), (0, Hp - H))).astype(compute_dtype)
    b1_p = jnp.pad(b1, ((0, 0), (0, Hp - H))).astype(jnp.float32)
    w2_p = jnp.pad(w2, ((0, Hp - H), (0, Op - O))).astype(compute_dtype)
    b2_p = jnp.pad(b2, ((0, 0), (0, Op - O))).astype(jnp.float32)

    kernel = functools.partial(_graph_classifier_kernel, readout=readout)
    out = pl.pallas_call(
        kernel,
        out_shape=jax.ShapeDtypeStruct((Bp, Op), jnp.float32),
        grid=(Bp // tb,),
        in_specs=[
            pl.BlockSpec((tb, N, D), lambda i: (i, 0, 0)),   # h: streamed per tile
            pl.BlockSpec((tb, N), lambda i: (i, 0)),         # mask: streamed per tile
            pl.BlockSpec((D, Hp), lambda i: (0, 0)),         # weights: resident
            pl.BlockSpec((1, Hp), lambda i: (0, 0)),
            pl.BlockSpec((Hp, Op), lambda i: (0, 0)),
            pl.BlockSpec((1, Op), lambda i: (0, 0)),
        ],
        out_specs=pl.BlockSpec((tb, Op), lambda i: (i, 0)),
        compiler_params=pltpu.CompilerParams(
            dimension_semantics=("parallel",)),
    )(h_p, mask_p, w1_p, b1_p, w2_p, b2_p)

    return out[:B, :O]


def _reference_forward(h, mask, w1, b1, w2, b2, readout="mean"):
    m3 = mask[:, :, None]
    if readout == "mean":
        feats = (h * m3).sum(1) / jnp.maximum(mask.sum(1, keepdims=True), 1.0)
    elif readout == "sum":
        feats = (h * m3).sum(1)
    else:
        feats = jnp.where(m3 > 0, h, -jnp.inf).max(1)
        feats = jnp.where(mask.sum(1, keepdims=True) > 0, feats, 0.0)
    hidden = jnp.maximum(feats @ w1 + b1, 0.0)
    return hidden @ w2 + b2


def _init_linear(key, fan_in, fan_out):
    # Deterministic init mimicking nn.Linear's uniform(-1/sqrt(fan_in), 1/sqrt(fan_in)).
    kw, kb = jax.random.split(key)
    bound = 1.0 / jnp.sqrt(float(fan_in))
    w = jax.random.uniform(kw, (fan_in, fan_out), jnp.float32, -bound, bound)
    b = jax.random.uniform(kb, (1, fan_out), jnp.float32, -bound, bound)
    return w, b


if __name__ == "__main__":
    # Small shapes: B graphs, N max nodes, input_dim=32, hidden_dim=64, output_dim=8
    B, N, D, H, O = 4, 16, 32, 64, 8

    key = jax.random.PRNGKey(0)
    k_h, k_cnt, k_fc, k_cls = jax.random.split(key, 4)

    # Node features with NON-zero padding rows: the in-kernel mask must remove them.
    h = jax.random.normal(k_h, (B, N, D), jnp.float32)
    node_counts = jax.random.randint(k_cnt, (B,), 3, N + 1)   # 3..N valid nodes per graph
    mask = (jnp.arange(N)[None, :] < node_counts[:, None]).astype(jnp.float32)

    # Parameters (fc: D->H, classify: H->O)
    w1, b1 = _init_linear(k_fc, D, H)
    w2, b2 = _init_linear(k_cls, H, O)

    for readout in ("mean", "sum", "max"):
        out = graph_classifier_forward(h, mask, w1, b1, w2, b2, readout=readout)
        out = jax.block_until_ready(out)
        ref = _reference_forward(h, mask, w1, b1, w2, b2, readout=readout)
        assert out.shape == (B, O)
        # tolerance covers the EUP approx reciprocal used for the mean readout
        assert jnp.allclose(out, ref, atol=2e-2, rtol=2e-2), f"mismatch vs reference ({readout})"

    print("KERNEL_OK")
</pallas_src>

<mosaic_0001>
module attributes {stable_mosaic.version = 11 : i64} {
  func.func @_graph_classifier_kernel(%arg0: i32, %arg1: memref<8x16x32xf32, #tpu.memory_space<vmem>>, %arg2: memref<8x16xf32, #tpu.memory_space<vmem>>, %arg3: memref<32x128xf32, #tpu.memory_space<vmem>>, %arg4: memref<1x128xf32, #tpu.memory_space<vmem>>, %arg5: memref<128x128xf32, #tpu.memory_space<vmem>>, %arg6: memref<1x128xf32, #tpu.memory_space<vmem>>, %arg7: memref<8x128xf32, #tpu.memory_space<vmem>>) attributes {dimension_semantics = [#tpu.dimension_semantics<parallel>], iteration_bounds = array<i64: 1>, scalar_prefetch = 0 : i64, scratch_operands = 0 : i64, tpu.core_type = #tpu.core_type<tc>, window_params = [{transform_indices = @transform_0, window_bounds = array<i64: 8, 16, 32>}, {transform_indices = @transform_1, window_bounds = array<i64: 8, 16>}, {pipeline_mode = #tpu.pipeline_mode<synchronous>, transform_indices = @transform_2, window_bounds = array<i64: 32, 128>}, {pipeline_mode = #tpu.pipeline_mode<synchronous>, transform_indices = @transform_3, window_bounds = array<i64: 1, 128>}, {pipeline_mode = #tpu.pipeline_mode<synchronous>, transform_indices = @transform_4, window_bounds = array<i64: 128, 128>}, {pipeline_mode = #tpu.pipeline_mode<synchronous>, transform_indices = @transform_5, window_bounds = array<i64: 1, 128>}, {transform_indices = @transform_6, window_bounds = array<i64: 8, 128>}]} {
    %c0 = arith.constant 0 : index
    %c0_0 = arith.constant 0 : index
    %c0_1 = arith.constant 0 : index
    %0 = vector.load %arg1[%c0, %c0_0, %c0_1] : memref<8x16x32xf32, #tpu.memory_space<vmem>>, vector<8x16x32xf32>
    %c0_2 = arith.constant 0 : index
    %c0_3 = arith.constant 0 : index
    %1 = vector.load %arg2[%c0_2, %c0_3] : memref<8x16xf32, #tpu.memory_space<vmem>>, vector<8x16xf32>
    %c0_4 = arith.constant 0 : index
    %c0_5 = arith.constant 0 : index
    %2 = vector.load %arg3[%c0_4, %c0_5] : memref<32x128xf32, #tpu.memory_space<vmem>>, vector<32x128xf32>
    %c0_6 = arith.constant 0 : index
    %c0_7 = arith.constant 0 : index
    %3 = vector.load %arg4[%c0_6, %c0_7] : memref<1x128xf32, #tpu.memory_space<vmem>>, vector<1x128xf32>
    %c0_8 = arith.constant 0 : index
    %c0_9 = arith.constant 0 : index
    %4 = vector.load %arg5[%c0_8, %c0_9] : memref<128x128xf32, #tpu.memory_space<vmem>>, vector<128x128xf32>
    %c0_10 = arith.constant 0 : index
    %c0_11 = arith.constant 0 : index
    %5 = vector.load %arg6[%c0_10, %c0_11] : memref<1x128xf32, #tpu.memory_space<vmem>>, vector<1x128xf32>
    %6 = vector.shape_cast %1 : vector<8x16xf32> to vector<8x1x16xf32>
    "tpu.trace_start"() <{level = 10 : i32, message = "bon,bnd->bod"}> : () -> ()
    %cst = arith.constant dense<0.000000e+00> : vector<8x1x32xf32>
    %7 = tpu.matmul %6, %0, %cst {dimension_numbers = #tpu.dot_dimension_numbers<[2], [1], [1], [2], [0, 0, 0, 1, 1, 2], [0], [0]>} : vector<8x1x16xf32>, vector<8x16x32xf32>, vector<8x1x32xf32> -> vector<8x1x32xf32>
    "tpu.trace_stop"() : () -> ()
    %8 = vector.shape_cast %7 : vector<8x1x32xf32> to vector<8x32xf32>
    %cst_12 = arith.constant dense<0.000000e+00> : vector<8xf32>
    %9 = vector.multi_reduction <add>, %1, %cst_12 [1] : vector<8x16xf32> to vector<8xf32>
    %10 = vector.shape_cast %9 : vector<8xf32> to vector<8x1xf32>
    %cst_13 = arith.constant 1.000000e+00 : f32
    %11 = vector.broadcast %cst_13 : f32 to vector<8x1xf32>
    %12 = arith.maximumf %10, %11 : vector<8x1xf32>
    %13 = tpu.reciprocal %12 {approx = true} : vector<8x1xf32> -> vector<8x1xf32>
    %14 = vector.broadcast %13 : vector<8x1xf32> to vector<8x32xf32>
    %15 = arith.mulf %8, %14 : vector<8x32xf32>
    %cst_14 = arith.constant dense<0.000000e+00> : vector<8x128xf32>
    %16 = tpu.matmul %15, %2, %cst_14 {dimension_numbers = #tpu.dot_dimension_numbers<[1], [0], [0], [1], [0, 0, 1, 1], [], []>} : vector<8x32xf32>, vector<32x128xf32>, vector<8x128xf32> -> vector<8x128xf32>
    %17 = vector.broadcast %3 : vector<1x128xf32> to vector<8x128xf32>
    %18 = arith.addf %16, %17 : vector<8x128xf32>
    %cst_15 = arith.constant 0.000000e+00 : f32
    %19 = vector.broadcast %cst_15 : f32 to vector<8x128xf32>
    %20 = arith.maximumf %18, %19 : vector<8x128xf32>
    %cst_16 = arith.constant dense<0.000000e+00> : vector<8x128xf32>
    %21 = tpu.matmul %20, %4, %cst_16 {dimension_numbers = #tpu.dot_dimension_numbers<[1], [0], [0], [1], [0, 0, 1, 1], [], []>} : vector<8x128xf32>, vector<128x128xf32>, vector<8x128xf32> -> vector<8x128xf32>
    %22 = vector.broadcast %5 : vector<1x128xf32> to vector<8x128xf32>
    %23 = arith.addf %21, %22 : vector<8x128xf32>
    %c0_17 = arith.constant 0 : index
    %c0_18 = arith.constant 0 : index
    %24 = vector.load %arg7[%c0_17, %c0_18] : memref<8x128xf32, #tpu.memory_space<vmem>>, vector<8x128xf32>
    tpu.vector_store %arg7[%c0_17, %c0_18], %23 {strides = array<i32>} : memref<8x128xf32, #tpu.memory_space<vmem>>, vector<8x128xf32>,
    return
  }
  func.func @transform_0(%arg0: i32) -> (i32, i32, i32) {
    %c0_i32 = arith.constant 0 : i32
    %c0_i32_0 = arith.constant 0 : i32
    %c0_i32_1 = arith.constant 0 : i32
    return %arg0, %c0_i32, %c0_i32_0 : i32, i32, i32
  }
  func.func @transform_1(%arg0: i32) -> (i32, i32) {
    %c0_i32 = arith.constant 0 : i32
    %c0_i32_0 = arith.constant 0 : i32
    return %arg0, %c0_i32 : i32, i32
  }
  func.func @transform_2(%arg0: i32) -> (i32, i32) {
    %c0_i32 = arith.constant 0 : i32
    %c0_i32_0 = arith.constant 0 : i32
    %c0_i32_1 = arith.constant 0 : i32
    return %c0_i32, %c0_i32_0 : i32, i32
  }
  func.func @transform_3(%arg0: i32) -> (i32, i32) {
    %c0_i32 = arith.constant 0 : i32
    %c0_i32_0 = arith.constant 0 : i32
    %c0_i32_1 = arith.constant 0 : i32
    return %c0_i32, %c0_i32_0 : i32, i32
  }
  func.func @transform_4(%arg0: i32) -> (i32, i32) {
    %c0_i32 = arith.constant 0 : i32
    %c0_i32_0 = arith.constant 0 : i32
    %c0_i32_1 = arith.constant 0 : i32
    return %c0_i32, %c0_i32_0 : i32, i32
  }
  func.func @transform_5(%arg0: i32) -> (i32, i32) {
    %c0_i32 = arith.constant 0 : i32
    %c0_i32_0 = arith.constant 0 : i32
    %c0_i32_1 = arith.constant 0 : i32
    return %c0_i32, %c0_i32_0 : i32, i32
  }
  func.func @transform_6(%arg0: i32) -> (i32, i32) {
    %c0_i32 = arith.constant 0 : i32
    %c0_i32_0 = arith.constant 0 : i32
    return %arg0, %c0_i32 : i32, i32
  }
}

</mosaic_0001>

<llo_original>
// kernel: tpu_custom_call.1
$region0: #{tpu_custom_call.1}
  #allocation0 [shape = 'u32[]', space=smem, size = 0x4, offset = 0x4, fixed_abs, tag = 'smem constant byte address 0x4 - core index']
  #allocation1 [shape = 'u32[144,128]{1,0:T(1,128)}', space=vmem, size = 0x12000, scoped, tag = 'internal scratch']
  %s0 = inlined_call_operand.hbm [shape: f32[8,16,32], index: 0, kind: input, shape index: {}]
  %s1 = inlined_call_operand.hbm [shape: f32[8,16], index: 1, kind: input, shape index: {}]
  %s2 = inlined_call_operand.hbm [shape: f32[32,128], index: 2, kind: input, shape index: {}]
  %s3 = inlined_call_operand.vmem [shape: f32[1,128], index: 3, kind: input, shape index: {}]
  %s4 = inlined_call_operand.hbm [shape: f32[128,128], index: 4, kind: input, shape index: {}]
  %s5 = inlined_call_operand.vmem [shape: f32[1,128], index: 5, kind: input, shape index: {}]
  %s6 = inlined_call_operand.hbm [shape: f32[8,128], index: 6, kind: output, shape index: {}]
  %s7 = sld [smem:[#allocation0]]
  $region50: #{tpu_custom_call.1} parent=0
    _
  %s9 = ssub.s32 1, %s7
  %s10 = scalar_select 0, %s9, %s7
  $region1: #{tpu_custom_call.1} parent=0
    #allocation2 [shape = 'u8[65536]{0}', space=vmem, size = 0x10000, scoped, tag = 'input window, operand 0, single buffered']
    #allocation3 [shape = 's32[1]{0}', space=sflag, size = 0x4, scoped, tag = 'scoped memory for tpu_custom_call.1']
    #allocation4 [shape = 's32[1]{0}', space=sflag, size = 0x4, scoped, tag = 'scoped memory for tpu_custom_call.1']
    #allocation5 [shape = 'u8[4096]{0}', space=vmem, size = 0x1000, scoped, tag = 'input window, operand 1, single buffered']
    #allocation6 [shape = 's32[1]{0}', space=sflag, size = 0x4, scoped, tag = 'scoped memory for tpu_custom_call.1']
    #allocation7 [shape = 'u8[16384]{0}', space=vmem, size = 0x4000, scoped, tag = 'input window, operand 2, single buffered']
    #allocation8 [shape = 'u8[65536]{0}', space=vmem, size = 0x10000, scoped, tag = 'input window, operand 4, single buffered']
    #allocation9 [shape = 's32[1]{0}', space=sflag, size = 0x4, scoped, tag = 'scoped memory for tpu_custom_call.1']
    #allocation10 [shape = 'u8[4096]{0}', space=vmem, size = 0x1000, scoped, tag = 'output window, operand 0, single buffered']
    %11 = vsyncpa [#allocation3], 0
    %12 = vsyncpa [#allocation6], 0
    %13 = vsyncpa [#allocation9], 0
    %14 = vsyncpa [#allocation4], 0
    // Predicated region
    $region2: #{tpu_custom_call.1} parent=1 // pred_check
      _
    $region3: #{tpu_custom_call.1} parent=1 // pred_check_branch
      %16 = sbr.rel (0) target = $region5
    $region4: #{tpu_custom_call.1} parent=1 // pred_region
      %s18 = ssub.s32 2048, 2048
      %19 = vsyncadd [#allocation3], %s18
      %s20 = sshll.u32 [#allocation2], 4
      %s21 = int_to_ptr.vmem [resolvable:$true] %s20
      %26 = dma.hbm_to_vmem [thread:$0]  %s0, 2048, %s21, [#allocation3], 128, 128, 8
    $region5: #{tpu_custom_call.1} parent=1 // pred_fallthru
      _
    // Predicated region
    $region6: #{tpu_custom_call.1} parent=1 // pred_check
      _
    $region7: #{tpu_custom_call.1} parent=1 // pred_check_branch
      %28 = sbr.rel (0) target = $region9
    $region8: #{tpu_custom_call.1} parent=1 // pred_region
      %s30 = ssub.s32 128, 128
      %31 = vsyncadd [#allocation6], %s30
      %s33 = sshll.u32 [#allocation5], 4
      %s34 = int_to_ptr.vmem [resolvable:$true] %s33
      %36 = dma.hbm_to_vmem [thread:$0]  %s1, 128, %s34, [#allocation6]
    $region9: #{tpu_custom_call.1} parent=1 // pred_fallthru
      _
    // Predicated region
    $region10: #{tpu_custom_call.1} parent=1 // pred_check
      _
    $region11: #{tpu_custom_call.1} parent=1 // pred_check_branch
      %38 = sbr.rel (0) target = $region13
    $region12: #{tpu_custom_call.1} parent=1 // pred_region
      %s40 = ssub.s32 512, 512
      %41 = vsyncadd [#allocation6], %s40
      %s42 = sshll.u32 [#allocation7], 4
      %s43 = int_to_ptr.vmem [resolvable:$true] %s42
      %48 = dma.hbm_to_vmem [thread:$0]  %s2, 512, %s43, [#allocation6], 128, 128, 8
    $region13: #{tpu_custom_call.1} parent=1 // pred_fallthru
      _
    // Predicated region
    $region14: #{tpu_custom_call.1} parent=1 // pred_check
      _
    $region15: #{tpu_custom_call.1} parent=1 // pred_check_branch
      %50 = sbr.rel (0) target = $region17
    $region16: #{tpu_custom_call.1} parent=1 // pred_region
      _
    $region17: #{tpu_custom_call.1} parent=1 // pred_fallthru
      _
    // Predicated region
    $region18: #{tpu_custom_call.1} parent=1 // pred_check
      _
    $region19: #{tpu_custom_call.1} parent=1 // pred_check_branch
      %52 = sbr.rel (0) target = $region21
    $region20: #{tpu_custom_call.1} parent=1 // pred_region
      %s54 = ssub.s32 2048, 2048
      %55 = vsyncadd [#allocation9], %s54
      %s56 = sshll.u32 [#allocation8], 4
      %s57 = int_to_ptr.vmem [resolvable:$true] %s56
      %62 = dma.hbm_to_vmem [thread:$0]  %s4, 2048, %s57, [#allocation9], 128, 128, 8
    $region21: #{tpu_custom_call.1} parent=1 // pred_fallthru
      _
    // Predicated region
    $region22: #{tpu_custom_call.1} parent=1 // pred_check
      _
    $region23: #{tpu_custom_call.1} parent=1 // pred_check_branch
      %64 = sbr.rel (0) target = $region25
    $region24: #{tpu_custom_call.1} parent=1 // pred_region
      _
    $region25: #{tpu_custom_call.1} parent=1 // pred_fallthru
      _
    // Predicated region
    $region26: #{tpu_custom_call.1} parent=1 // pred_check
      _
    $region27: #{tpu_custom_call.1} parent=1 // pred_check_branch
      %66 = sbr.rel (0) target = $region29
    $region28: #{tpu_custom_call.1} parent=1 // pred_region
      %67 = dma.done [#allocation3], 2048
    $region29: #{tpu_custom_call.1} parent=1 // pred_fallthru
      _
    // Predicated region
    $region30: #{tpu_custom_call.1} parent=1 // pred_check
      _
    $region31: #{tpu_custom_call.1} parent=1 // pred_check_branch
      %69 = sbr.rel (0) target = $region33
    $region32: #{tpu_custom_call.1} parent=1 // pred_region
      %70 = dma.done [#allocation6], 128
    $region33: #{tpu_custom_call.1} parent=1 // pred_fallthru
      _
    // Predicated region
    $region34: #{tpu_custom_call.1} parent=1 // pred_check
      _
    $region35: #{tpu_custom_call.1} parent=1 // pred_check_branch
      %72 = sbr.rel (0) target = $region37
    $region36: #{tpu_custom_call.1} parent=1 // pred_region
      %73 = dma.done [#allocation6], 512
    $region37: #{tpu_custom_call.1} parent=1 // pred_fallthru
      _
    // Predicated region
    $region38: #{tpu_custom_call.1} parent=1 // pred_check
      _
    $region39: #{tpu_custom_call.1} parent=1 // pred_check_branch
      %75 = sbr.rel (0) target = $region41
    $region40: #{tpu_custom_call.1} parent=1 // pred_region
      %76 = dma.done [#allocation9], 2048
    $region41: #{tpu_custom_call.1} parent=1 // pred_fallthru
      _
    %v77 = vld [vmem:[#allocation2] sm:$0xff]
    %v78 = vld [vmem:[#allocation2 + $0x8] sm:$0xff]
    %v79 = vld [vmem:[#allocation2 + $0x10] sm:$0xff]
    %v80 = vld [vmem:[#allocation2 + $0x18] sm:$0xff]
    %v81 = vld [vmem:[#allocation2 + $0x20] sm:$0xff]
    %v82 = vld [vmem:[#allocation2 + $0x28] sm:$0xff]
    %v83 = vld [vmem:[#allocation2 + $0x30] sm:$0xff]
    %v84 = vld [vmem:[#allocation2 + $0x38] sm:$0xff]
    %v85 = vld [vmem:[#allocation2 + $0x40] sm:$0xff]
    %v86 = vld [vmem:[#allocation2 + $0x48] sm:$0xff]
    %v87 = vld [vmem:[#allocation2 + $0x50] sm:$0xff]
    %v88 = vld [vmem:[#allocation2 + $0x58] sm:$0xff]
    %v89 = vld [vmem:[#allocation2 + $0x60] sm:$0xff]
    %v90 = vld [vmem:[#allocation2 + $0x68] sm:$0xff]
    %v91 = vld [vmem:[#allocation2 + $0x70] sm:$0xff]
    %v92 = vld [vmem:[#allocation2 + $0x78] sm:$0xff]
    %v93 = vld [vmem:[#allocation5] sm:$0xff]
    %v94 = vld [vmem:[#allocation7] sm:$0xff]
    %v95 = vld [vmem:[#allocation7 + $0x8] sm:$0xff]
    %v96 = vld [vmem:[#allocation7 + $0x10] sm:$0xff]
    %v97 = vld [vmem:[#allocation7 + $0x18] sm:$0xff]
    %v98 = vld [vmem:[%s3] sm:$0x1]
    %v99 = vld [vmem:[#allocation8] sm:$0xff]
    %v100 = vld [vmem:[#allocation8 + $0x8] sm:$0xff]
    %v101 = vld [vmem:[#allocation8 + $0x10] sm:$0xff]
    %v102 = vld [vmem:[#allocation8 + $0x18] sm:$0xff]
    %v103 = vld [vmem:[#allocation8 + $0x20] sm:$0xff]
    %v104 = vld [vmem:[#allocation8 + $0x28] sm:$0xff]
    %v105 = vld [vmem:[#allocation8 + $0x30] sm:$0xff]
    %v106 = vld [vmem:[#allocation8 + $0x38] sm:$0xff]
    %v107 = vld [vmem:[#allocation8 + $0x40] sm:$0xff]
    %v108 = vld [vmem:[#allocation8 + $0x48] sm:$0xff]
    %v109 = vld [vmem:[#allocation8 + $0x50] sm:$0xff]
    %v110 = vld [vmem:[#allocation8 + $0x58] sm:$0xff]
    %v111 = vld [vmem:[#allocation8 + $0x60] sm:$0xff]
    %v112 = vld [vmem:[#allocation8 + $0x68] sm:$0xff]
    %v113 = vld [vmem:[#allocation8 + $0x70] sm:$0xff]
    %v114 = vld [vmem:[#allocation8 + $0x78] sm:$0xff]
    %v115 = vld [vmem:[%s5] sm:$0x1]
    %v117 = vcombine.high %v93, %v93
    %v119 = vunpack.c.l.s4 1966171168
    %v120 = vunpack.c.0.s8 %v119
    %v121 = vlaneseq
    %v122 = vshrl.u32 %v121, 7
    %v123 = vsub.s32 %v120, %v122
    %v124 = vrot.slane %v93, %v123
    %v126 = vunpack.c.l.s4 1966171168
    %v127 = vunpack.c.0.s8 %v126
    %v128 = vlaneseq
    %v129 = vshrl.u32 %v128, 7
    %v130 = vsub.s32 %v127, %v129
    %v131 = vrot.slane %v117, %v130
    %v132 = vcombine.high %v124, %v124
    %v133 = vcombine.high %v131, %v131
    %v135 = vunpack.c.l.s4 1966171168
    %v136 = vunpack.c.0.s8 %v135
    %v137 = vlaneseq
    %v138 = vshrl.u32 %v137, 7
    %v139 = vsub.s32 %v136, %v138
    %v140 = vrot.slane %v124, %v139
    %v142 = vunpack.c.l.s4 1966171168
    %v143 = vunpack.c.0.s8 %v142
    %v144 = vlaneseq
    %v145 = vshrl.u32 %v144, 7
    %v146 = vsub.s32 %v143, %v145
    %v147 = vrot.slane %v131, %v146
    %v149 = vunpack.c.l.s4 1966171168
    %v150 = vunpack.c.0.s8 %v149
    %v151 = vlaneseq
    %v152 = vshrl.u32 %v151, 7
    %v153 = vsub.s32 %v150, %v152
    %v154 = vrot.slane %v132, %v153
    %v156 = vunpack.c.l.s4 1966171168
    %v157 = vunpack.c.0.s8 %v156
    %v158 = vlaneseq
    %v159 = vshrl.u32 %v158, 7
    %v160 = vsub.s32 %v157, %v159
    %v161 = vrot.slane %v133, %v160
    %v162 = vcombine.high %v140, %v140
    %v163 = vcombine.high %v147, %v147
    %v164 = vcombine.high %v154, %v154
    %v165 = vcombine.high %v161, %v161
    %vm166 = vcmask 130048
    %v167 = vsel %vm166, %v140, 0
    %169 = vmatprep.subr.mxu0 0.0
    %170 = vmatpush1.msra.mxu0 %v77
    %171 = vmatprep.subr.mxu0 0.0
    %172 = vmatpush1.msra.mxu0 %v78
    %173 = vmatprep.subr.mxu0 0.0
    %174 = vmatpush1.msra.mxu0 0.0
    %175 = vmatprep.subr.mxu0 0.0
    %176 = vmatpush1.msra.mxu0 0.0
    %177 = vmatprep.subr.mxu0 0.0
    %178 = vmatpush1.msra.mxu0 0.0
    %179 = vmatprep.subr.mxu0 0.0
    %180 = vmatpush1.msra.mxu0 0.0
    %181 = vmatprep.subr.mxu0 0.0
    %182 = vmatpush1.msra.mxu0 0.0
    %183 = vmatprep.subr.mxu0 0.0
    %184 = vmatpush1.msra.mxu0 0.0
    %185 = vmatprep.subr.mxu0 0.0
    %186 = vmatpush1.msra.mxu0 0.0
    %187 = vmatprep.subr.mxu0 0.0
    %188 = vmatpush1.msra.mxu0 0.0
    %189 = vmatprep.subr.mxu0 0.0
    %190 = vmatpush1.msra.mxu0 0.0
    %191 = vmatprep.subr.mxu0 0.0
    %192 = vmatpush1.msra.mxu0 0.0
    %193 = vmatprep.subr.mxu0 0.0
    %194 = vmatpush1.msra.mxu0 0.0
    %195 = vmatprep.subr.mxu0 0.0
    %196 = vmatpush1.msra.mxu0 0.0
    %197 = vmatprep.subr.mxu0 0.0
    %198 = vmatpush1.msra.mxu0 0.0
    %199 = vmatprep.subr.mxu0 0.0
    %200 = vmatpush1.msra.mxu0 0.0
    %201 = vmatprep.subr.mxu0 0.0
    %202 = vmatpush1.msra.mxu0 0.0
    %203 = vmatprep.subr.mxu0 0.0
    %204 = vmatpush1.msra.mxu0 0.0
    %205 = vmatprep.subr.mxu0 0.0
    %206 = vmatpush1.msra.mxu0 0.0
    %207 = vmatprep.subr.mxu0 0.0
    %208 = vmatpush1.msra.mxu0 0.0
    %209 = vmatprep.subr.mxu0 0.0
    %210 = vmatpush1.msra.mxu0 0.0
    %211 = vmatprep.subr.mxu0 0.0
    %212 = vmatpush1.msra.mxu0 0.0
    %213 = vmatprep.subr.mxu0 0.0
    %214 = vmatpush1.msra.mxu0 0.0
    %215 = vmatprep.subr.mxu0 0.0
    %216 = vmatpush1.msra.mxu0 0.0
    %217 = vmatprep.subr.mxu0 0.0
    %218 = vmatpush1.msra.mxu0 0.0
    %219 = vmatprep.subr.mxu0 0.0
    %220 = vmatpush1.msra.mxu0 0.0
    %221 = vmatprep.subr.mxu0 0.0
    %222 = vmatpush1.msra.mxu0 0.0
    %223 = vmatprep.subr.mxu0 0.0
    %224 = vmatpush1.msra.mxu0 0.0
    %225 = vmatprep.subr.mxu0 0.0
    %226 = vmatpush1.msra.mxu0 0.0
    %227 = vmatprep.subr.mxu0 0.0
    %228 = vmatpush1.msra.mxu0 0.0
    %229 = vmatprep.subr.mxu0 0.0
    %230 = vmatpush1.msra.mxu0 0.0
    %231 = vmatprep.subr.mxu0 0.0
    %232 = vmatpush1.msra.mxu0 0.0
    %233 = vmatprep.mubr.f32.mxu0 0.0
    %234 = vmatmul.mubr.f32.gmra.mrb[0].mxu0 %v167
    %v235 = vpop.f32.mrb[0].mxu0
    %v236 = vadd.f32 0.0, %v235
    %v237 = vpop.f32.mrb[0].mxu0
    %238 = vdwg.mxu0
    %v239 = vsel %vm166, %v154, 0
    %241 = vmatprep.subr.mxu0 0.0
    %242 = vmatpush1.msra.mxu0 %v79
    %243 = vmatprep.subr.mxu0 0.0
    %244 = vmatpush1.msra.mxu0 %v80
    %245 = vmatprep.subr.mxu0 0.0
    %246 = vmatpush1.msra.mxu0 0.0
    %247 = vmatprep.subr.mxu0 0.0
    %248 = vmatpush1.msra.mxu0 0.0
    %249 = vmatprep.subr.mxu0 0.0
    %250 = vmatpush1.msra.mxu0 0.0
    %251 = vmatprep.subr.mxu0 0.0
    %252 = vmatpush1.msra.mxu0 0.0
    %253 = vmatprep.subr.mxu0 0.0
    %254 = vmatpush1.msra.mxu0 0.0
    %255 = vmatprep.subr.mxu0 0.0
    %256 = vmatpush1.msra.mxu0 0.0
    %257 = vmatprep.subr.mxu0 0.0
    %258 = vmatpush1.msra.mxu0 0.0
    %259 = vmatprep.subr.mxu0 0.0
    %260 = vmatpush1.msra.mxu0 0.0
    %261 = vmatprep.subr.mxu0 0.0
    %262 = vmatpush1.msra.mxu0 0.0
    %263 = vmatprep.subr.mxu0 0.0
    %264 = vmatpush1.msra.mxu0 0.0
    %265 = vmatprep.subr.mxu0 0.0
    %266 = vmatpush1.msra.mxu0 0.0
    %267 = vmatprep.subr.mxu0 0.0
    %268 = vmatpush1.msra.mxu0 0.0
    %269 = vmatprep.subr.mxu0 0.0
    %270 = vmatpush1.msra.mxu0 0.0
    %271 = vmatprep.subr.mxu0 0.0
    %272 = vmatpush1.msra.mxu0 0.0
    %273 = vmatprep.subr.mxu0 0.0
    %274 = vmatpush1.msra.mxu0 0.0
    %275 = vmatprep.subr.mxu0 0.0
    %276 = vmatpush1.msra.mxu0 0.0
    %277 = vmatprep.subr.mxu0 0.0
    %278 = vmatpush1.msra.mxu0 0.0
    %279 = vmatprep.subr.mxu0 0.0
    %280 = vmatpush1.msra.mxu0 0.0
    %281 = vmatprep.subr.mxu0 0.0
    %282 = vmatpush1.msra.mxu0 0.0
    %283 = vmatprep.subr.mxu0 0.0
    %284 = vmatpush1.msra.mxu0 0.0
    %285 = vmatprep.subr.mxu0 0.0
    %286 = vmatpush1.msra.mxu0 0.0
    %287 = vmatprep.subr.mxu0 0.0
    %288 = vmatpush1.msra.mxu0 0.0
    %289 = vmatprep.subr.mxu0 0.0
    %290 = vmatpush1.msra.mxu0 0.0
    %291 = vmatprep.subr.mxu0 0.0
    %292 = vmatpush1.msra.mxu0 0.0
    %293 = vmatprep.subr.mxu0 0.0
    %294 = vmatpush1.msra.mxu0 0.0
    %295 = vmatprep.subr.mxu0 0.0
    %296 = vmatpush1.msra.mxu0 0.0
    %297 = vmatprep.subr.mxu0 0.0
    %298 = vmatpush1.msra.mxu0 0.0
    %299 = vmatprep.subr.mxu0 0.0
    %300 = vmatpush1.msra.mxu0 0.0
    %301 = vmatprep.subr.mxu0 0.0
    %302 = vmatpush1.msra.mxu0 0.0
    %303 = vmatprep.subr.mxu0 0.0
    %304 = vmatpush1.msra.mxu0 0.0
    %305 = vmatprep.mubr.f32.mxu0 0.0
    %306 = vmatmul.mubr.f32.gmra.mrb[0].mxu0 %v239
    %v307 = vpop.f32.mrb[0].mxu0
    %v308 = vadd.f32 0.0, %v307
    %v309 = vpop.f32.mrb[0].mxu0
    %310 = vdwg.mxu0
    %v311 = vsel %vm166, %v162, 0
    %313 = vmatprep.subr.mxu0 0.0
    %314 = vmatpush1.msra.mxu0 %v81
    %315 = vmatprep.subr.mxu0 0.0
    %316 = vmatpush1.msra.mxu0 %v82
    %317 = vmatprep.subr.mxu0 0.0
    %318 = vmatpush1.msra.mxu0 0.0
    %319 = vmatprep.subr.mxu0 0.0
    %320 = vmatpush1.msra.mxu0 0.0
    %321 = vmatprep.subr.mxu0 0.0
    %322 = vmatpush1.msra.mxu0 0.0
    %323 = vmatprep.subr.mxu0 0.0
    %324 = vmatpush1.msra.mxu0 0.0
    %325 = vmatprep.subr.mxu0 0.0
    %326 = vmatpush1.msra.mxu0 0.0
    %327 = vmatprep.subr.mxu0 0.0
    %328 = vmatpush1.msra.mxu0 0.0
    %329 = vmatprep.subr.mxu0 0.0
    %330 = vmatpush1.msra.mxu0 0.0
    %331 = vmatprep.subr.mxu0 0.0
    %332 = vmatpush1.msra.mxu0 0.0
    %333 = vmatprep.subr.mxu0 0.0
    %334 = vmatpush1.msra.mxu0 0.0
    %335 = vmatprep.subr.mxu0 0.0
    %336 = vmatpush1.msra.mxu0 0.0
    %337 = vmatprep.subr.mxu0 0.0
    %338 = vmatpush1.msra.mxu0 0.0
    %339 = vmatprep.subr.mxu0 0.0
    %340 = vmatpush1.msra.mxu0 0.0
    %341 = vmatprep.subr.mxu0 0.0
    %342 = vmatpush1.msra.mxu0 0.0
    %343 = vmatprep.subr.mxu0 0.0
    %344 = vmatpush1.msra.mxu0 0.0
    %345 = vmatprep.subr.mxu0 0.0
    %346 = vmatpush1.msra.mxu0 0.0
    %347 = vmatprep.subr.mxu0 0.0
    %348 = vmatpush1.msra.mxu0 0.0
    %349 = vmatprep.subr.mxu0 0.0
    %350 = vmatpush1.msra.mxu0 0.0
    %351 = vmatprep.subr.mxu0 0.0
    %352 = vmatpush1.msra.mxu0 0.0
    %353 = vmatprep.subr.mxu0 0.0
    %354 = vmatpush1.msra.mxu0 0.0
    %355 = vmatprep.subr.mxu0 0.0
    %356 = vmatpush1.msra.mxu0 0.0
    %357 = vmatprep.subr.mxu0 0.0
    %358 = vmatpush1.msra.mxu0 0.0
    %359 = vmatprep.subr.mxu0 0.0
    %360 = vmatpush1.msra.mxu0 0.0
    %361 = vmatprep.subr.mxu0 0.0
    %362 = vmatpush1.msra.mxu0 0.0
    %363 = vmatprep.subr.mxu0 0.0
    %364 = vmatpush1.msra.mxu0 0.0
    %365 = vmatprep.subr.mxu0 0.0
    %366 = vmatpush1.msra.mxu0 0.0
    %367 = vmatprep.subr.mxu0 0.0
    %368 = vmatpush1.msra.mxu0 0.0
    %369 = vmatprep.subr.mxu0 0.0
    %370 = vmatpush1.msra.mxu0 0.0
    %371 = vmatprep.subr.mxu0 0.0
    %372 = vmatpush1.msra.mxu0 0.0
    %373 = vmatprep.subr.mxu0 0.0
    %374 = vmatpush1.msra.mxu0 0.0
    %375 = vmatprep.subr.mxu0 0.0
    %376 = vmatpush1.msra.mxu0 0.0
    %377 = vmatprep.mubr.f32.mxu0 0.0
    %378 = vmatmul.mubr.f32.gmra.mrb[0].mxu0 %v311
    %v379 = vpop.f32.mrb[0].mxu0
    %v380 = vadd.f32 0.0, %v379
    %v381 = vpop.f32.mrb[0].mxu0
    %382 = vdwg.mxu0
    %v383 = vsel %vm166, %v164, 0
    %385 = vmatprep.subr.mxu0 0.0
    %386 = vmatpush1.msra.mxu0 %v83
    %387 = vmatprep.subr.mxu0 0.0
    %388 = vmatpush1.msra.mxu0 %v84
    %389 = vmatprep.subr.mxu0 0.0
    %390 = vmatpush1.msra.mxu0 0.0
    %391 = vmatprep.subr.mxu0 0.0
    %392 = vmatpush1.msra.mxu0 0.0
    %393 = vmatprep.subr.mxu0 0.0
    %394 = vmatpush1.msra.mxu0 0.0
    %395 = vmatprep.subr.mxu0 0.0
    %396 = vmatpush1.msra.mxu0 0.0
    %397 = vmatprep.subr.mxu0 0.0
    %398 = vmatpush1.msra.mxu0 0.0
    %399 = vmatprep.subr.mxu0 0.0
    %400 = vmatpush1.msra.mxu0 0.0
    %401 = vmatprep.subr.mxu0 0.0
    %402 = vmatpush1.msra.mxu0 0.0
    %403 = vmatprep.subr.mxu0 0.0
    %404 = vmatpush1.msra.mxu0 0.0
    %405 = vmatprep.subr.mxu0 0.0
    %406 = vmatpush1.msra.mxu0 0.0
    %407 = vmatprep.subr.mxu0 0.0
    %408 = vmatpush1.msra.mxu0 0.0
    %409 = vmatprep.subr.mxu0 0.0
    %410 = vmatpush1.msra.mxu0 0.0
    %411 = vmatprep.subr.mxu0 0.0
    %412 = vmatpush1.msra.mxu0 0.0
    %413 = vmatprep.subr.mxu0 0.0
    %414 = vmatpush1.msra.mxu0 0.0
    %415 = vmatprep.subr.mxu0 0.0
    %416 = vmatpush1.msra.mxu0 0.0
    %417 = vmatprep.subr.mxu0 0.0
    %418 = vmatpush1.msra.mxu0 0.0
    %419 = vmatprep.subr.mxu0 0.0
    %420 = vmatpush1.msra.mxu0 0.0
    %421 = vmatprep.subr.mxu0 0.0
    %422 = vmatpush1.msra.mxu0 0.0
    %423 = vmatprep.subr.mxu0 0.0
    %424 = vmatpush1.msra.mxu0 0.0
    %425 = vmatprep.subr.mxu0 0.0
    %426 = vmatpush1.msra.mxu0 0.0
    %427 = vmatprep.subr.mxu0 0.0
    %428 = vmatpush1.msra.mxu0 0.0
    %429 = vmatprep.subr.mxu0 0.0
    %430 = vmatpush1.msra.mxu0 0.0
    %431 = vmatprep.subr.mxu0 0.0
    %432 = vmatpush1.msra.mxu0 0.0
    %433 = vmatprep.subr.mxu0 0.0
    %434 = vmatpush1.msra.mxu0 0.0
    %435 = vmatprep.subr.mxu0 0.0
    %436 = vmatpush1.msra.mxu0 0.0
    %437 = vmatprep.subr.mxu0 0.0
    %438 = vmatpush1.msra.mxu0 0.0
    %439 = vmatprep.subr.mxu0 0.0
    %440 = vmatpush1.msra.mxu0 0.0
    %441 = vmatprep.subr.mxu0 0.0
    %442 = vmatpush1.msra.mxu0 0.0
    %443 = vmatprep.subr.mxu0 0.0
    %444 = vmatpush1.msra.mxu0 0.0
    %445 = vmatprep.subr.mxu0 0.0
    %446 = vmatpush1.msra.mxu0 0.0
    %447 = vmatprep.subr.mxu0 0.0
    %448 = vmatpush1.msra.mxu0 0.0
    %449 = vmatprep.mubr.f32.mxu0 0.0
    %450 = vmatmul.mubr.f32.gmra.mrb[0].mxu0 %v383
    %v451 = vpop.f32.mrb[0].mxu0
    %v452 = vadd.f32 0.0, %v451
    %v453 = vpop.f32.mrb[0].mxu0
    %454 = vdwg.mxu0
    %v455 = vsel %vm166, %v147, 0
    %457 = vmatprep.subr.mxu0 0.0
    %458 = vmatpush1.msra.mxu0 %v85
    %459 = vmatprep.subr.mxu0 0.0
    %460 = vmatpush1.msra.mxu0 %v86
    %461 = vmatprep.subr.mxu0 0.0
    %462 = vmatpush1.msra.mxu0 0.0
    %463 = vmatprep.subr.mxu0 0.0
    %464 = vmatpush1.msra.mxu0 0.0
    %465 = vmatprep.subr.mxu0 0.0
    %466 = vmatpush1.msra.mxu0 0.0
    %467 = vmatprep.subr.mxu0 0.0
    %468 = vmatpush1.msra.mxu0 0.0
    %469 = vmatprep.subr.mxu0 0.0
    %470 = vmatpush1.msra.mxu0 0.0
    %471 = vmatprep.subr.mxu0 0.0
    %472 = vmatpush1.msra.mxu0 0.0
    %473 = vmatprep.subr.mxu0 0.0
    %474 = vmatpush1.msra.mxu0 0.0
    %475 = vmatprep.subr.mxu0 0.0
    %476 = vmatpush1.msra.mxu0 0.0
    %477 = vmatprep.subr.mxu0 0.0
    %478 = vmatpush1.msra.mxu0 0.0
    %479 = vmatprep.subr.mxu0 0.0
    %480 = vmatpush1.msra.mxu0 0.0
    %481 = vmatprep.subr.mxu0 0.0
    %482 = vmatpush1.msra.mxu0 0.0
    %483 = vmatprep.subr.mxu0 0.0
    %484 = vmatpush1.msra.mxu0 0.0
    %485 = vmatprep.subr.mxu0 0.0
    %486 = vmatpush1.msra.mxu0 0.0
    %487 = vmatprep.subr.mxu0 0.0
    %488 = vmatpush1.msra.mxu0 0.0
    %489 = vmatprep.subr.mxu0 0.0
    %490 = vmatpush1.msra.mxu0 0.0
    %491 = vmatprep.subr.mxu0 0.0
    %492 = vmatpush1.msra.mxu0 0.0
    %493 = vmatprep.subr.mxu0 0.0
    %494 = vmatpush1.msra.mxu0 0.0
    %495 = vmatprep.subr.mxu0 0.0
    %496 = vmatpush1.msra.mxu0 0.0
    %497 = vmatprep.subr.mxu0 0.0
    %498 = vmatpush1.msra.mxu0 0.0
    %499 = vmatprep.subr.mxu0 0.0
    %500 = vmatpush1.msra.mxu0 0.0
    %501 = vmatprep.subr.mxu0 0.0
    %502 = vmatpush1.msra.mxu0 0.0
    %503 = vmatprep.subr.mxu0 0.0
    %504 = vmatpush1.msra.mxu0 0.0
    %505 = vmatprep.subr.mxu0 0.0
    %506 = vmatpush1.msra.mxu0 0.0
    %507 = vmatprep.subr.mxu0 0.0
    %508 = vmatpush1.msra.mxu0 0.0
    %509 = vmatprep.subr.mxu0 0.0
    %510 = vmatpush1.msra.mxu0 0.0
    %511 = vmatprep.subr.mxu0 0.0
    %512 = vmatpush1.msra.mxu0 0.0
    %513 = vmatprep.subr.mxu0 0.0
    %514 = vmatpush1.msra.mxu0 0.0
    %515 = vmatprep.subr.mxu0 0.0
    %516 = vmatpush1.msra.mxu0 0.0
    %517 = vmatprep.subr.mxu0 0.0
    %518 = vmatpush1.msra.mxu0 0.0
    %519 = vmatprep.subr.mxu0 0.0
    %520 = vmatpush1.msra.mxu0 0.0
    %521 = vmatprep.mubr.f32.mxu0 0.0
    %522 = vmatmul.mubr.f32.gmra.mrb[0].mxu0 %v455
    %v523 = vpop.f32.mrb[0].mxu0
    %v524 = vadd.f32 0.0, %v523
    %v525 = vpop.f32.mrb[0].mxu0
    %526 = vdwg.mxu0
    %v527 = vsel %vm166, %v161, 0
    %529 = vmatprep.subr.mxu0 0.0
    %530 = vmatpush1.msra.mxu0 %v87
    %531 = vmatprep.subr.mxu0 0.0
    %532 = vmatpush1.msra.mxu0 %v88
    %533 = vmatprep.subr.mxu0 0.0
    %534 = vmatpush1.msra.mxu0 0.0
    %535 = vmatprep.subr.mxu0 0.0
    %536 = vmatpush1.msra.mxu0 0.0
    %537 = vmatprep.subr.mxu0 0.0
    %538 = vmatpush1.msra.mxu0 0.0
    %539 = vmatprep.subr.mxu0 0.0
    %540 = vmatpush1.msra.mxu0 0.0
    %541 = vmatprep.subr.mxu0 0.0
    %542 = vmatpush1.msra.mxu0 0.0
    %543 = vmatprep.subr.mxu0 0.0
    %544 = vmatpush1.msra.mxu0 0.0
    %545 = vmatprep.subr.mxu0 0.0
    %546 = vmatpush1.msra.mxu0 0.0
    %547 = vmatprep.subr.mxu0 0.0
    %548 = vmatpush1.msra.mxu0 0.0
    %549 = vmatprep.subr.mxu0 0.0
    %550 = vmatpush1.msra.mxu0 0.0
    %551 = vmatprep.subr.mxu0 0.0
    %552 = vmatpush1.msra.mxu0 0.0
    %553 = vmatprep.subr.mxu0 0.0
    %554 = vmatpush1.msra.mxu0 0.0
    %555 = vmatprep.subr.mxu0 0.0
    %556 = vmatpush1.msra.mxu0 0.0
    %557 = vmatprep.subr.mxu0 0.0
    %558 = vmatpush1.msra.mxu0 0.0
    %559 = vmatprep.subr.mxu0 0.0
    %560 = vmatpush1.msra.mxu0 0.0
    %561 = vmatprep.subr.mxu0 0.0
    %562 = vmatpush1.msra.mxu0 0.0
    %563 = vmatprep.subr.mxu0 0.0
    %564 = vmatpush1.msra.mxu0 0.0
    %565 = vmatprep.subr.mxu0 0.0
    %566 = vmatpush1.msra.mxu0 0.0
    %567 = vmatprep.subr.mxu0 0.0
    %568 = vmatpush1.msra.mxu0 0.0
    %569 = vmatprep.subr.mxu0 0.0
    %570 = vmatpush1.msra.mxu0 0.0
    %571 = vmatprep.subr.mxu0 0.0
    %572 = vmatpush1.msra.mxu0 0.0
    %573 = vmatprep.subr.mxu0 0.0
    %574 = vmatpush1.msra.mxu0 0.0
    %575 = vmatprep.subr.mxu0 0.0
    %576 = vmatpush1.msra.mxu0 0.0
    %577 = vmatprep.subr.mxu0 0.0
    %578 = vmatpush1.msra.mxu0 0.0
    %579 = vmatprep.subr.mxu0 0.0
    %580 = vmatpush1.msra.mxu0 0.0
    %581 = vmatprep.subr.mxu0 0.0
    %582 = vmatpush1.msra.mxu0 0.0
    %583 = vmatprep.subr.mxu0 0.0
    %584 = vmatpush1.msra.mxu0 0.0
    %585 = vmatprep.subr.mxu0 0.0
    %586 = vmatpush1.msra.mxu0 0.0
    %587 = vmatprep.subr.mxu0 0.0
    %588 = vmatpush1.msra.mxu0 0.0
    %589 = vmatprep.subr.mxu0 0.0
    %590 = vmatpush1.msra.mxu0 0.0
    %591 = vmatprep.subr.mxu0 0.0
    %592 = vmatpush1.msra.mxu0 0.0
    %593 = vmatprep.mubr.f32.mxu0 0.0
    %594 = vmatmul.mubr.f32.gmra.mrb[0].mxu0 %v527
    %v595 = vpop.f32.mrb[0].mxu0
    %v596 = vadd.f32 0.0, %v595
    %v597 = vpop.f32.mrb[0].mxu0
    %598 = vdwg.mxu0
    %v599 = vsel %vm166, %v163, 0
    %601 = vmatprep.subr.mxu0 0.0
    %602 = vmatpush1.msra.mxu0 %v89
    %603 = vmatprep.subr.mxu0 0.0
    %604 = vmatpush1.msra.mxu0 %v90
    %605 = vmatprep.subr.mxu0 0.0
    %606 = vmatpush1.msra.mxu0 0.0
    %607 = vmatprep.subr.mxu0 0.0
    %608 = vmatpush1.msra.mxu0 0.0
    %609 = vmatprep.subr.mxu0 0.0
    %610 = vmatpush1.msra.mxu0 0.0
    %611 = vmatprep.subr.mxu0 0.0
    %612 = vmatpush1.msra.mxu0 0.0
    %613 = vmatprep.subr.mxu0 0.0
    %614 = vmatpush1.msra.mxu0 0.0
    %615 = vmatprep.subr.mxu0 0.0
    %616 = vmatpush1.msra.mxu0 0.0
    %617 = vmatprep.subr.mxu0 0.0
    %618 = vmatpush1.msra.mxu0 0.0
    %619 = vmatprep.subr.mxu0 0.0
    %620 = vmatpush1.msra.mxu0 0.0
    %621 = vmatprep.subr.mxu0 0.0
    %622 = vmatpush1.msra.mxu0 0.0
    %623 = vmatprep.subr.mxu0 0.0
    %624 = vmatpush1.msra.mxu0 0.0
    %625 = vmatprep.subr.mxu0 0.0
    %626 = vmatpush1.msra.mxu0 0.0
    %627 = vmatprep.subr.mxu0 0.0
    %628 = vmatpush1.msra.mxu0 0.0
    %629 = vmatprep.subr.mxu0 0.0
    %630 = vmatpush1.msra.mxu0 0.0
    %631 = vmatprep.subr.mxu0 0.0
    %632 = vmatpush1.msra.mxu0 0.0
    %633 = vmatprep.subr.mxu0 0.0
    %634 = vmatpush1.msra.mxu0 0.0
    %635 = vmatprep.subr.mxu0 0.0
    %636 = vmatpush1.msra.mxu0 0.0
    %637 = vmatprep.subr.mxu0 0.0
    %638 = vmatpush1.msra.mxu0 0.0
    %639 = vmatprep.subr.mxu0 0.0
    %640 = vmatpush1.msra.mxu0 0.0
    %641 = vmatprep.subr.mxu0 0.0
    %642 = vmatpush1.msra.mxu0 0.0
    %643 = vmatprep.subr.mxu0 0.0
    %644 = vmatpush1.msra.mxu0 0.0
    %645 = vmatprep.subr.mxu0 0.0
    %646 = vmatpush1.msra.mxu0 0.0
    %647 = vmatprep.subr.mxu0 0.0
    %648 = vmatpush1.msra.mxu0 0.0
    %649 = vmatprep.subr.mxu0 0.0
    %650 = vmatpush1.msra.mxu0 0.0
    %651 = vmatprep.subr.mxu0 0.0
    %652 = vmatpush1.msra.mxu0 0.0
    %653 = vmatprep.subr.mxu0 0.0
    %654 = vmatpush1.msra.mxu0 0.0
    %655 = vmatprep.subr.mxu0 0.0
    %656 = vmatpush1.msra.mxu0 0.0
    %657 = vmatprep.subr.mxu0 0.0
    %658 = vmatpush1.msra.mxu0 0.0
    %659 = vmatprep.subr.mxu0 0.0
    %660 = vmatpush1.msra.mxu0 0.0
    %661 = vmatprep.subr.mxu0 0.0
    %662 = vmatpush1.msra.mxu0 0.0
    %663 = vmatprep.subr.mxu0 0.0
    %664 = vmatpush1.msra.mxu0 0.0
    %665 = vmatprep.mubr.f32.mxu0 0.0
    %666 = vmatmul.mubr.f32.gmra.mrb[0].mxu0 %v599
    %v667 = vpop.f32.mrb[0].mxu0
    %v668 = vadd.f32 0.0, %v667
    %v669 = vpop.f32.mrb[0].mxu0
    %670 = vdwg.mxu0
    %v671 = vsel %vm166, %v165, 0
    %673 = vmatprep.subr.mxu0 0.0
    %674 = vmatpush1.msra.mxu0 %v91
    %675 = vmatprep.subr.mxu0 0.0
    %676 = vmatpush1.msra.mxu0 %v92
    %677 = vmatprep.subr.mxu0 0.0
    %678 = vmatpush1.msra.mxu0 0.0
    %679 = vmatprep.subr.mxu0 0.0
    %680 = vmatpush1.msra.mxu0 0.0
    %681 = vmatprep.subr.mxu0 0.0
    %682 = vmatpush1.msra.mxu0 0.0
    %683 = vmatprep.subr.mxu0 0.0
    %684 = vmatpush1.msra.mxu0 0.0
    %685 = vmatprep.subr.mxu0 0.0
    %686 = vmatpush1.msra.mxu0 0.0
    %687 = vmatprep.subr.mxu0 0.0
    %688 = vmatpush1.msra.mxu0 0.0
    %689 = vmatprep.subr.mxu0 0.0
    %690 = vmatpush1.msra.mxu0 0.0
    %691 = vmatprep.subr.mxu0 0.0
    %692 = vmatpush1.msra.mxu0 0.0
    %693 = vmatprep.subr.mxu0 0.0
    %694 = vmatpush1.msra.mxu0 0.0
    %695 = vmatprep.subr.mxu0 0.0
    %696 = vmatpush1.msra.mxu0 0.0
    %697 = vmatprep.subr.mxu0 0.0
    %698 = vmatpush1.msra.mxu0 0.0
    %699 = vmatprep.subr.mxu0 0.0
    %700 = vmatpush1.msra.mxu0 0.0
    %701 = vmatprep.subr.mxu0 0.0
    %702 = vmatpush1.msra.mxu0 0.0
    %703 = vmatprep.subr.mxu0 0.0
    %704 = vmatpush1.msra.mxu0 0.0
    %705 = vmatprep.subr.mxu0 0.0
    %706 = vmatpush1.msra.mxu0 0.0
    %707 = vmatprep.subr.mxu0 0.0
    %708 = vmatpush1.msra.mxu0 0.0
    %709 = vmatprep.subr.mxu0 0.0
    %710 = vmatpush1.msra.mxu0 0.0
    %711 = vmatprep.subr.mxu0 0.0
    %712 = vmatpush1.msra.mxu0 0.0
    %713 = vmatprep.subr.mxu0 0.0
    %714 = vmatpush1.msra.mxu0 0.0
    %715 = vmatprep.subr.mxu0 0.0
    %716 = vmatpush1.msra.mxu0 0.0
    %717 = vmatprep.subr.mxu0 0.0
    %718 = vmatpush1.msra.mxu0 0.0
    %719 = vmatprep.subr.mxu0 0.0
    %720 = vmatpush1.msra.mxu0 0.0
    %721 = vmatprep.subr.mxu0 0.0
    %722 = vmatpush1.msra.mxu0 0.0
    %723 = vmatprep.subr.mxu0 0.0
    %724 = vmatpush1.msra.mxu0 0.0
    %725 = vmatprep.subr.mxu0 0.0
    %726 = vmatpush1.msra.mxu0 0.0
    %727 = vmatprep.subr.mxu0 0.0
    %728 = vmatpush1.msra.mxu0 0.0
    %729 = vmatprep.subr.mxu0 0.0
    %730 = vmatpush1.msra.mxu0 0.0
    %731 = vmatprep.subr.mxu0 0.0
    %732 = vmatpush1.msra.mxu0 0.0
    %733 = vmatprep.subr.mxu0 0.0
    %734 = vmatpush1.msra.mxu0 0.0
    %735 = vmatprep.subr.mxu0 0.0
    %736 = vmatpush1.msra.mxu0 0.0
    %737 = vmatprep.mubr.f32.mxu0 0.0
    %738 = vmatmul.mubr.f32.gmra.mrb[0].mxu0 %v671
    %v739 = vpop.f32.mrb[0].mxu0
    %v740 = vadd.f32 0.0, %v739
    %v741 = vpop.f32.mrb[0].mxu0
    %742 = vdwg.mxu0
    %v743 = vsel %vm166, %v93, 0.0
    %744 = vadd.xlane.f32.xlu0 %v743
    %v745 = vpop.xlane.xlu0 %744
    %v746 = vmax.f32 %v745, 1.0
    %v747 = vrcp.pop %v746
    %v749 = vrot.slane %v747, 1
    %v750 = vrot.slane %v747, 2
    %v751 = vrot.slane %v747, 3
    %v752 = vrot.slane %v747, 4
    %v753 = vrot.slane %v747, 5
    %v754 = vrot.slane %v747, 6
    %v755 = vrot.slane %v747, 7
    %v764 = vmul.f32 %v236, %v747
    %v765 = vmul.f32 %v308, %v749
    %v766 = vmul.f32 %v380, %v750
    %v767 = vmul.f32 %v452, %v751
    %v768 = vmul.f32 %v524, %v752
    %v769 = vmul.f32 %v596, %v753
    %v770 = vmul.f32 %v668, %v754
    %v771 = vmul.f32 %v740, %v755
    %v773 = vlaneseq
    %v774 = vshrl.u32 %v773, 7
    %v775 = vsub.s32 0, %v774
    %v776 = vrot.slane %v98, %v775
    %v786 = vrot.slane %v765, 7
    %vm787 = vcmask 1041409
    %v788 = vsel %vm787, %v786, %v764
    %v789 = vrot.slane %v766, 6
    %vm790 = vcmask 1042434
    %v791 = vsel %vm790, %v789, %v788
    %v792 = vrot.slane %v767, 5
    %vm793 = vcmask 1043459
    %v794 = vsel %vm793, %v792, %v791
    %v795 = vrot.slane %v768, 4
    %vm796 = vcmask 1044484
    %v797 = vsel %vm796, %v795, %v794
    %v798 = vrot.slane %v769, 3
    %vm799 = vcmask 1045509
    %v800 = vsel %vm799, %v798, %v797
    %v801 = vrot.slane %v770, 2
    %vm802 = vcmask 1046534
    %v803 = vsel %vm802, %v801, %v800
    %v804 = vrot.slane %v771, 1
    %vm805 = vcmask 1047559
    %v806 = vsel %vm805, %v804, %v803
    %vm807 = vcmask 261120
    %v808 = vsel %vm807, %v806, 0
    %810 = vmatprep.subr.mxu0 0.0
    %811 = vmatpush1.msra.mxu0 %v94
    %812 = vmatprep.subr.mxu0 0.0
    %813 = vmatpush1.msra.mxu0 %v95
    %814 = vmatprep.subr.mxu0 0.0
    %815 = vmatpush1.msra.mxu0 %v96
    %816 = vmatprep.subr.mxu0 0.0
    %817 = vmatpush1.msra.mxu0 %v97
    %818 = vmatprep.subr.mxu0 0.0
    %819 = vmatpush1.msra.mxu0 0.0
    %820 = vmatprep.subr.mxu0 0.0
    %821 = vmatpush1.msra.mxu0 0.0
    %822 = vmatprep.subr.mxu0 0.0
    %823 = vmatpush1.msra.mxu0 0.0
    %824 = vmatprep.subr.mxu0 0.0
    %825 = vmatpush1.msra.mxu0 0.0
    %826 = vmatprep.subr.mxu0 0.0
    %827 = vmatpush1.msra.mxu0 0.0
    %828 = vmatprep.subr.mxu0 0.0
    %829 = vmatpush1.msra.mxu0 0.0
    %830 = vmatprep.subr.mxu0 0.0
    %831 = vmatpush1.msra.mxu0 0.0
    %832 = vmatprep.subr.mxu0 0.0
    %833 = vmatpush1.msra.mxu0 0.0
    %834 = vmatprep.subr.mxu0 0.0
    %835 = vmatpush1.msra.mxu0 0.0
    %836 = vmatprep.subr.mxu0 0.0
    %837 = vmatpush1.msra.mxu0 0.0
    %838 = vmatprep.subr.mxu0 0.0
    %839 = vmatpush1.msra.mxu0 0.0
    %840 = vmatprep.subr.mxu0 0.0
    %841 = vmatpush1.msra.mxu0 0.0
    %842 = vmatprep.subr.mxu0 0.0
    %843 = vmatpush1.msra.mxu0 0.0
    %844 = vmatprep.subr.mxu0 0.0
    %845 = vmatpush1.msra.mxu0 0.0
    %846 = vmatprep.subr.mxu0 0.0
    %847 = vmatpush1.msra.mxu0 0.0
    %848 = vmatprep.subr.mxu0 0.0
    %849 = vmatpush1.msra.mxu0 0.0
    %850 = vmatprep.subr.mxu0 0.0
    %851 = vmatpush1.msra.mxu0 0.0
    %852 = vmatprep.subr.mxu0 0.0
    %853 = vmatpush1.msra.mxu0 0.0
    %854 = vmatprep.subr.mxu0 0.0
    %855 = vmatpush1.msra.mxu0 0.0
    %856 = vmatprep.subr.mxu0 0.0
    %857 = vmatpush1.msra.mxu0 0.0
    %858 = vmatprep.subr.mxu0 0.0
    %859 = vmatpush1.msra.mxu0 0.0
    %860 = vmatprep.subr.mxu0 0.0
    %861 = vmatpush1.msra.mxu0 0.0
    %862 = vmatprep.subr.mxu0 0.0
    %863 = vmatpush1.msra.mxu0 0.0
    %864 = vmatprep.subr.mxu0 0.0
    %865 = vmatpush1.msra.mxu0 0.0
    %866 = vmatprep.subr.mxu0 0.0
    %867 = vmatpush1.msra.mxu0 0.0
    %868 = vmatprep.subr.mxu0 0.0
    %869 = vmatpush1.msra.mxu0 0.0
    %870 = vmatprep.subr.mxu0 0.0
    %871 = vmatpush1.msra.mxu0 0.0
    %872 = vmatprep.subr.mxu0 0.0
    %873 = vmatpush1.msra.mxu0 0.0
    %874 = vmatprep.mubr.f32.mxu0 0.0
    %875 = vmatmul.mubr.f32.gmra.mrb[0].mxu0 %v808
    %v876 = vpop.f32.mrb[0].mxu0
    %v877 = vadd.f32 %v776, %v876
    %v878 = vpop.f32.mrb[0].mxu0
    %879 = vdwg.mxu0
    %v880 = vmax.f32 %v877, 0.0
    %v882 = vlaneseq
    %v883 = vshrl.u32 %v882, 7
    %v884 = vsub.s32 0, %v883
    %v885 = vrot.slane %v115, %v884
    %887 = vmatprep.subr.mxu0 0.0
    %888 = vmatpush1.msra.mxu0 %v99
    %889 = vmatprep.subr.mxu0 0.0
    %890 = vmatpush1.msra.mxu0 %v100
    %891 = vmatprep.subr.mxu0 0.0
    %892 = vmatpush1.msra.mxu0 %v101
    %893 = vmatprep.subr.mxu0 0.0
    %894 = vmatpush1.msra.mxu0 %v102
    %895 = vmatprep.subr.mxu0 0.0
    %896 = vmatpush1.msra.mxu0 %v103
    %897 = vmatprep.subr.mxu0 0.0
    %898 = vmatpush1.msra.mxu0 %v104
    %899 = vmatprep.subr.mxu0 0.0
    %900 = vmatpush1.msra.mxu0 %v105
    %901 = vmatprep.subr.mxu0 0.0
    %902 = vmatpush1.msra.mxu0 %v106
    %903 = vmatprep.subr.mxu0 0.0
    %904 = vmatpush1.msra.mxu0 %v107
    %905 = vmatprep.subr.mxu0 0.0
    %906 = vmatpush1.msra.mxu0 %v108
    %907 = vmatprep.subr.mxu0 0.0
    %908 = vmatpush1.msra.mxu0 %v109
    %909 = vmatprep.subr.mxu0 0.0
    %910 = vmatpush1.msra.mxu0 %v110
    %911 = vmatprep.subr.mxu0 0.0
    %912 = vmatpush1.msra.mxu0 %v111
    %913 = vmatprep.subr.mxu0 0.0
    %914 = vmatpush1.msra.mxu0 %v112
    %915 = vmatprep.subr.mxu0 0.0
    %916 = vmatpush1.msra.mxu0 %v113
    %917 = vmatprep.subr.mxu0 0.0
    %918 = vmatpush1.msra.mxu0 %v114
    %919 = vmatprep.subr.mxu0 0.0
    %920 = vmatpush1.msra.mxu0 0.0
    %921 = vmatprep.subr.mxu0 0.0
    %922 = vmatpush1.msra.mxu0 0.0
    %923 = vmatprep.subr.mxu0 0.0
    %924 = vmatpush1.msra.mxu0 0.0
    %925 = vmatprep.subr.mxu0 0.0
    %926 = vmatpush1.msra.mxu0 0.0
    %927 = vmatprep.subr.mxu0 0.0
    %928 = vmatpush1.msra.mxu0 0.0
    %929 = vmatprep.subr.mxu0 0.0
    %930 = vmatpush1.msra.mxu0 0.0
    %931 = vmatprep.subr.mxu0 0.0
    %932 = vmatpush1.msra.mxu0 0.0
    %933 = vmatprep.subr.mxu0 0.0
    %934 = vmatpush1.msra.mxu0 0.0
    %935 = vmatprep.subr.mxu0 0.0
    %936 = vmatpush1.msra.mxu0 0.0
    %937 = vmatprep.subr.mxu0 0.0
    %938 = vmatpush1.msra.mxu0 0.0
    %939 = vmatprep.subr.mxu0 0.0
    %940 = vmatpush1.msra.mxu0 0.0
    %941 = vmatprep.subr.mxu0 0.0
    %942 = vmatpush1.msra.mxu0 0.0
    %943 = vmatprep.subr.mxu0 0.0
    %944 = vmatpush1.msra.mxu0 0.0
    %945 = vmatprep.subr.mxu0 0.0
    %946 = vmatpush1.msra.mxu0 0.0
    %947 = vmatprep.subr.mxu0 0.0
    %948 = vmatpush1.msra.mxu0 0.0
    %949 = vmatprep.subr.mxu0 0.0
    %950 = vmatpush1.msra.mxu0 0.0
    %951 = vmatprep.mubr.f32.mxu0 0.0
    %952 = vmatmul.mubr.f32.gmra.mrb[0].mxu0 %v880
    %v953 = vpop.f32.mrb[0].mxu0
    %v954 = vadd.f32 %v885, %v953
    %v955 = vpop.f32.mrb[0].mxu0
    %956 = vdwg.mxu0
    %957 = vst [vmem:[#allocation10] sm:$0xff] %v954
    // Predicated region
    $region42: #{tpu_custom_call.1} parent=1 // pred_check
      _
    $region43: #{tpu_custom_call.1} parent=1 // pred_check_branch
      %959 = sbr.rel (0) target = $region45
    $region44: #{tpu_custom_call.1} parent=1 // pred_region
      %s961 = ssub.s32 128, 128
      %962 = vsyncadd [#allocation4], %s961
      %s964 = sshll.u32 [#allocation10], 4
      %s965 = int_to_ptr.vmem [resolvable:$true] %s964
      %967 = dma.vmem_to_hbm [thread:$0]  %s965, 128, %s6, [#allocation4]
    $region45: #{tpu_custom_call.1} parent=1 // pred_fallthru
      _
    // Predicated region
    $region46: #{tpu_custom_call.1} parent=1 // pred_check
      _
    $region47: #{tpu_custom_call.1} parent=1 // pred_check_branch
      %969 = sbr.rel (0) target = $region49
    $region48: #{tpu_custom_call.1} parent=1 // pred_region
      %970 = dma.done [#allocation4], 128
    $region49: #{tpu_custom_call.1} parent=1 // pred_fallthru
      _
    %971 = vsyncpa [#allocation3], 1
    %972 = vsyncpa [#allocation6], 1
    %973 = vsyncpa [#allocation9], 1
    %974 = vsyncpa [#allocation4], 1

</llo_original>
